<compile_context>
chip_gen: v6e
topology: v6e:2x2x1
jax: 0.10.0
libtpu: 0.0.40
codegen_flags: <defaults>
</compile_context>

<pallas_src>
import math
import jax
import jax.numpy as jnp
from jax import lax
from jax.experimental import pallas as pl
from jax.experimental.pallas import tpu as pltpu


def _attention_kernel(heads, dim_head):
    def kernel(x_ref, ctx_ref, wq_ref, wk_ref, wv_ref, wo_ref, bo_ref, o_ref,
               k_scr, v_scr, cat_scr):
        # Compute K/V projections only once per batch (q-tile index == 0).  The context
        # block index does not change across the q-tile axis, so its DMA is already
        # skipped by the pipeliner; this removes the redundant MXU work as well.
        @pl.when(pl.program_id(1) == 0)
        def _():
            ctx = ctx_ref[0].astype(jnp.bfloat16)                                 # [M, Dc]
            k_scr[...] = jnp.dot(ctx, wk_ref[...],
                                 preferred_element_type=jnp.float32).astype(jnp.bfloat16)
            v_scr[...] = jnp.dot(ctx, wv_ref[...],
                                 preferred_element_type=jnp.float32).astype(jnp.bfloat16)

        x = x_ref[0].astype(jnp.bfloat16)                                         # [TQ, Dq]
        # Softmax scale is already folded into Wq by the wrapper.
        q = jnp.dot(x, wq_ref[...],
                    preferred_element_type=jnp.float32).astype(jnp.bfloat16)      # [TQ, inner]
        k = k_scr[...]                                                            # [M, inner] bf16
        v = v_scr[...]                                                            # [M, inner] bf16

        # Per-head scaled-dot-product attention (static Python loop, static slices).
        for h in range(heads):
            s = h * dim_head
            qh = q[:, s:s + dim_head]                                             # [TQ, dh]
            kh = k[:, s:s + dim_head]                                             # [M,  dh]
            vh = v[:, s:s + dim_head]                                             # [M,  dh]

            # q @ k^T without materializing a transpose of k.
            logits = lax.dot_general(qh, kh, (((1,), (1,)), ((), ())),
                                     preferred_element_type=jnp.float32)          # [TQ, M]

            m = jnp.max(logits, axis=-1, keepdims=True)
            p = jnp.exp(logits - m)                                               # [TQ, M] f32
            inv_l = pl.reciprocal(jnp.sum(p, axis=-1, keepdims=True), approx=True)  # [TQ, 1]

            out_h = jnp.dot(p.astype(jnp.bfloat16), vh,
                            preferred_element_type=jnp.float32)                   # [TQ, dh]
            # Normalize AFTER the PV matmul ([TQ, dh] multiply instead of [TQ, M]) and
            # write directly into the head-concat buffer — no jnp.concatenate copy.
            cat_scr[:, s:s + dim_head] = (out_h * inv_l).astype(jnp.bfloat16)

        # Single O projection over the concatenated heads (+ bias).
        o = jnp.dot(cat_scr[...], wo_ref[...], preferred_element_type=jnp.float32)
        o = o + bo_ref[...]                                                       # [1, Dq] broadcast
        o_ref[0] = o.astype(o_ref.dtype)

    return kernel


def _device_vmem_bytes():
    """Best-effort query of per-core VMEM capacity; conservative default (v7x, 64 MiB)."""
    try:
        info = pltpu.get_tpu_info()
        for attr in ("vmem_capacity_bytes", "vmem_bytes", "vmem_size_bytes"):
            val = getattr(info, attr, None)
            if val:
                return int(val)
    except Exception:
        pass
    return 64 * 1024 * 1024


def _plan_q_tiling(n, tq_cap):
    """Return (n_padded, tq).  Single full tile for small N; otherwise fixed 128-multiple
    tiles (padding the tail) so the grid stays pipelined and (8,128)-aligned."""
    if n <= tq_cap:
        return n, n  # block == full dim is always legal, even for tiny/irregular N
    cands = [t for t in (512, 256, 128) if t <= tq_cap]
    for t in cands:
        if n % t == 0:
            return n, t
    t = cands[-1] if cands else 128
    n_pad = ((n + t - 1) // t) * t
    return n_pad, t


def pallas_attention(x, wq, wk, wv, wo, bo, heads, context=None):
    """x: [B, N, Dq] f32; context: [B, M, Dc] f32 or None; returns [B, N, Dq] f32."""
    if context is None:
        context = x  # bind BEFORE any query padding so keys stay un-padded
    B, N, Dq = x.shape
    _, M, Dc = context.shape
    inner = wq.shape[1]
    dim_head = inner // heads
    scale = dim_head ** (-0.5)

    # Device-aware VMEM budget and q-tile cap.
    vmem_cap = _device_vmem_bytes()
    if vmem_cap >= 100 * 1024 * 1024:      # v5e / v6e (128 MiB VMEM)
        vmem_limit = 100 * 1024 * 1024
        tq_cap = 512
    else:                                  # v7x (64 MiB VMEM)
        vmem_limit = 48 * 1024 * 1024
        tq_cap = 256

    n_pad, tq = _plan_q_tiling(N, tq_cap)
    x_in = x if n_pad == N else jnp.pad(x, ((0, 0), (0, n_pad - N), (0, 0)))

    # Fold the softmax scale into Wq; store weights bf16 in HBM (half the DMA bytes).
    wq_b = (wq * scale).astype(jnp.bfloat16)
    wk_b = wk.astype(jnp.bfloat16)
    wv_b = wv.astype(jnp.bfloat16)
    wo_b = wo.astype(jnp.bfloat16)
    bo_2d = bo.reshape(1, Dq).astype(jnp.float32)

    grid = (B, n_pad // tq)

    out = pl.pallas_call(
        _attention_kernel(heads, dim_head),
        out_shape=jax.ShapeDtypeStruct((B, n_pad, Dq), jnp.float32),
        grid_spec=pltpu.PrefetchScalarGridSpec(
            num_scalar_prefetch=0,
            grid=grid,
            in_specs=[
                pl.BlockSpec((1, tq, Dq), lambda b, qi: (b, qi, 0)),   # x tile
                pl.BlockSpec((1, M, Dc), lambda b, qi: (b, 0, 0)),     # full context (re-DMA'd per b only)
                pl.BlockSpec((Dq, inner), lambda b, qi: (0, 0)),       # Wq (scale folded in)
                pl.BlockSpec((Dc, inner), lambda b, qi: (0, 0)),       # Wk
                pl.BlockSpec((Dc, inner), lambda b, qi: (0, 0)),       # Wv
                pl.BlockSpec((inner, Dq), lambda b, qi: (0, 0)),       # Wo
                pl.BlockSpec((1, Dq), lambda b, qi: (0, 0)),           # O bias
            ],
            out_specs=pl.BlockSpec((1, tq, Dq), lambda b, qi: (b, qi, 0)),
            scratch_shapes=[
                pltpu.VMEM((M, inner), jnp.bfloat16),    # K cache (per batch)
                pltpu.VMEM((M, inner), jnp.bfloat16),    # V cache (per batch)
                pltpu.VMEM((tq, inner), jnp.bfloat16),   # per-tile head-concat buffer
            ],
        ),
        compiler_params=pltpu.CompilerParams(
            # qi must be the inner sequential ("arbitrary") axis so the K/V scratch
            # caches remain valid for the whole batch; b still shards across cores.
            dimension_semantics=("parallel", "arbitrary"),
            vmem_limit_bytes=vmem_limit,
        ),
    )(x_in, context, wq_b, wk_b, wv_b, wo_b, bo_2d)

    if n_pad != N:
        out = out[:, :N, :]
    return out


def reference_attention(x, wq, wk, wv, wo, bo, heads, context=None):
    if context is None:
        context = x
    B, N, _ = x.shape
    _, M, _ = context.shape
    inner = wq.shape[1]
    dh = inner // heads
    scale = dh ** (-0.5)
    q = x @ wq            # [B, N, inner]
    k = context @ wk      # [B, M, inner]
    v = context @ wv      # [B, M, inner]
    q = q.reshape(B, N, heads, dh).transpose(0, 2, 1, 3)
    k = k.reshape(B, M, heads, dh).transpose(0, 2, 1, 3)
    v = v.reshape(B, M, heads, dh).transpose(0, 2, 1, 3)
    logits = jnp.einsum('bhid,bhjd->bhij', q, k) * scale
    attn = jax.nn.softmax(logits, axis=-1)
    out = jnp.einsum('bhij,bhjd->bhid', attn, v)
    out = out.transpose(0, 2, 1, 3).reshape(B, N, inner)
    return out @ wo + bo


if __name__ == "__main__":
    # Small shapes consistent with the module's forward.
    B, N = 2, 8                 # batch, number of tokens
    query_dim = 32
    heads, dim_head = 2, 16
    inner = heads * dim_head    # 32

    key = jax.random.PRNGKey(0)
    kx, kq, kk, kv, ko, kb, kc, kk2, kv2 = jax.random.split(key, 9)

    x = jax.random.normal(kx, (B, N, query_dim), dtype=jnp.float32)
    wq = jax.random.normal(kq, (query_dim, inner), dtype=jnp.float32) * (1.0 / math.sqrt(query_dim))
    wk = jax.random.normal(kk, (query_dim, inner), dtype=jnp.float32) * (1.0 / math.sqrt(query_dim))
    wv = jax.random.normal(kv, (query_dim, inner), dtype=jnp.float32) * (1.0 / math.sqrt(query_dim))
    wo = jax.random.normal(ko, (inner, query_dim), dtype=jnp.float32) * (1.0 / math.sqrt(inner))
    bo = jax.random.normal(kb, (query_dim,), dtype=jnp.float32) * 0.01

    # --- self-attention (context=None) ---
    out = pallas_attention(x, wq, wk, wv, wo, bo, heads)
    out = jax.block_until_ready(out)
    ref = reference_attention(x, wq, wk, wv, wo, bo, heads)
    assert out.shape == (B, N, query_dim)
    # bf16 MXU operands + approx reciprocal -> looser tolerance than pure-f32.
    assert jnp.allclose(out, ref, atol=5e-2, rtol=5e-2), (
        "self-attn mismatch, max abs diff = %f" % float(jnp.max(jnp.abs(out - ref))))

    # --- cross-attention (different context length / dim) ---
    M, context_dim = 12, 16
    ctx = jax.random.normal(kc, (B, M, context_dim), dtype=jnp.float32)
    wk_c = jax.random.normal(kk2, (context_dim, inner), dtype=jnp.float32) * (1.0 / math.sqrt(context_dim))
    wv_c = jax.random.normal(kv2, (context_dim, inner), dtype=jnp.float32) * (1.0 / math.sqrt(context_dim))
    out_c = pallas_attention(x, wq, wk_c, wv_c, wo, bo, heads, context=ctx)
    out_c = jax.block_until_ready(out_c)
    ref_c = reference_attention(x, wq, wk_c, wv_c, wo, bo, heads, context=ctx)
    assert out_c.shape == (B, N, query_dim)
    assert jnp.allclose(out_c, ref_c, atol=5e-2, rtol=5e-2), (
        "cross-attn mismatch, max abs diff = %f" % float(jnp.max(jnp.abs(out_c - ref_c))))

    print("KERNEL_OK")
</pallas_src>

<mosaic_0001>
module attributes {stable_mosaic.version = 11 : i64} {
  func.func @kernel(%arg0: i32, %arg1: i32, %arg2: memref<1x8x32xf32, #tpu.memory_space<vmem>>, %arg3: memref<1x8x32xf32, #tpu.memory_space<vmem>>, %arg4: memref<32x32xbf16, #tpu.memory_space<vmem>>, %arg5: memref<32x32xbf16, #tpu.memory_space<vmem>>, %arg6: memref<32x32xbf16, #tpu.memory_space<vmem>>, %arg7: memref<32x32xbf16, #tpu.memory_space<vmem>>, %arg8: memref<1x32xf32, #tpu.memory_space<vmem>>, %arg9: memref<1x8x32xf32, #tpu.memory_space<vmem>>, %arg10: memref<8x32xbf16, #tpu.memory_space<vmem>>, %arg11: memref<8x32xbf16, #tpu.memory_space<vmem>>, %arg12: memref<8x32xbf16, #tpu.memory_space<vmem>>) attributes {dimension_semantics = [#tpu.dimension_semantics<parallel>, #tpu.dimension_semantics<arbitrary>], iteration_bounds = array<i64: 2, 1>, scalar_prefetch = 0 : i64, scratch_operands = 3 : i64, tpu.core_type = #tpu.core_type<tc>, window_params = [{transform_indices = @transform_0, window_bounds = array<i64: 1, 8, 32>}, {transform_indices = @transform_1, window_bounds = array<i64: 1, 8, 32>}, {pipeline_mode = #tpu.pipeline_mode<synchronous>, transform_indices = @transform_2, window_bounds = array<i64: 32, 32>}, {pipeline_mode = #tpu.pipeline_mode<synchronous>, transform_indices = @transform_3, window_bounds = array<i64: 32, 32>}, {pipeline_mode = #tpu.pipeline_mode<synchronous>, transform_indices = @transform_4, window_bounds = array<i64: 32, 32>}, {pipeline_mode = #tpu.pipeline_mode<synchronous>, transform_indices = @transform_5, window_bounds = array<i64: 32, 32>}, {pipeline_mode = #tpu.pipeline_mode<synchronous>, transform_indices = @transform_6, window_bounds = array<i64: 1, 32>}, {transform_indices = @transform_7, window_bounds = array<i64: 1, 8, 32>}]} {
    %c0_i32 = arith.constant 0 : i32
    %0 = arith.cmpi eq, %arg1, %c0_i32 : i32
    %1 = arith.extui %0 : i1 to i32
    %c0_i32_0 = arith.constant 0 : i32
    %2 = arith.cmpi ne, %1, %c0_i32_0 : i32
    scf.if %2 {
      %c0_30 = arith.constant 0 : index
      %c0_31 = arith.constant 0 : index
      %c0_32 = arith.constant 0 : index
      %56 = vector.load %arg3[%c0_30, %c0_31, %c0_32] : memref<1x8x32xf32, #tpu.memory_space<vmem>>, vector<1x8x32xf32>
      %57 = vector.shape_cast %56 : vector<1x8x32xf32> to vector<8x32xf32>
      %58 = arith.truncf %57 : vector<8x32xf32> to vector<8x32xbf16>
      %c0_33 = arith.constant 0 : index
      %c0_34 = arith.constant 0 : index
      %59 = vector.load %arg5[%c0_33, %c0_34] : memref<32x32xbf16, #tpu.memory_space<vmem>>, vector<32x32xbf16>
      %cst_35 = arith.constant dense<0.000000e+00> : vector<8x32xf32>
      %60 = tpu.matmul %58, %59, %cst_35 {dimension_numbers = #tpu.dot_dimension_numbers<[1], [0], [0], [1], [0, 0, 1, 1], [], []>} : vector<8x32xbf16>, vector<32x32xbf16>, vector<8x32xf32> -> vector<8x32xf32>
      %61 = arith.truncf %60 : vector<8x32xf32> to vector<8x32xbf16>
      %c0_36 = arith.constant 0 : index
      %c0_37 = arith.constant 0 : index
      %62 = vector.load %arg10[%c0_36, %c0_37] : memref<8x32xbf16, #tpu.memory_space<vmem>>, vector<8x32xbf16>
      tpu.vector_store %arg10[%c0_36, %c0_37], %61 {strides = array<i32>} : memref<8x32xbf16, #tpu.memory_space<vmem>>, vector<8x32xbf16>,
      %c0_38 = arith.constant 0 : index
      %c0_39 = arith.constant 0 : index
      %63 = vector.load %arg6[%c0_38, %c0_39] : memref<32x32xbf16, #tpu.memory_space<vmem>>, vector<32x32xbf16>
      %cst_40 = arith.constant dense<0.000000e+00> : vector<8x32xf32>
      %64 = tpu.matmul %58, %63, %cst_40 {dimension_numbers = #tpu.dot_dimension_numbers<[1], [0], [0], [1], [0, 0, 1, 1], [], []>} : vector<8x32xbf16>, vector<32x32xbf16>, vector<8x32xf32> -> vector<8x32xf32>
      %65 = arith.truncf %64 : vector<8x32xf32> to vector<8x32xbf16>
      %c0_41 = arith.constant 0 : index
      %c0_42 = arith.constant 0 : index
      %66 = vector.load %arg11[%c0_41, %c0_42] : memref<8x32xbf16, #tpu.memory_space<vmem>>, vector<8x32xbf16>
      tpu.vector_store %arg11[%c0_41, %c0_42], %65 {strides = array<i32>} : memref<8x32xbf16, #tpu.memory_space<vmem>>, vector<8x32xbf16>,
    } else {
    }
    %c0 = arith.constant 0 : index
    %c0_1 = arith.constant 0 : index
    %c0_2 = arith.constant 0 : index
    %3 = vector.load %arg2[%c0, %c0_1, %c0_2] : memref<1x8x32xf32, #tpu.memory_space<vmem>>, vector<1x8x32xf32>
    %4 = vector.shape_cast %3 : vector<1x8x32xf32> to vector<8x32xf32>
    %5 = arith.truncf %4 : vector<8x32xf32> to vector<8x32xbf16>
    %c0_3 = arith.constant 0 : index
    %c0_4 = arith.constant 0 : index
    %6 = vector.load %arg4[%c0_3, %c0_4] : memref<32x32xbf16, #tpu.memory_space<vmem>>, vector<32x32xbf16>
    %cst = arith.constant dense<0.000000e+00> : vector<8x32xf32>
    %7 = tpu.matmul %5, %6, %cst {dimension_numbers = #tpu.dot_dimension_numbers<[1], [0], [0], [1], [0, 0, 1, 1], [], []>} : vector<8x32xbf16>, vector<32x32xbf16>, vector<8x32xf32> -> vector<8x32xf32>
    %8 = arith.truncf %7 : vector<8x32xf32> to vector<8x32xbf16>
    %c0_5 = arith.constant 0 : index
    %c0_6 = arith.constant 0 : index
    %9 = vector.load %arg10[%c0_5, %c0_6] : memref<8x32xbf16, #tpu.memory_space<vmem>>, vector<8x32xbf16>
    %c0_7 = arith.constant 0 : index
    %c0_8 = arith.constant 0 : index
    %10 = vector.load %arg11[%c0_7, %c0_8] : memref<8x32xbf16, #tpu.memory_space<vmem>>, vector<8x32xbf16>
    %11 = vector.extract_strided_slice %8 {offsets = [0, 0], sizes = [8, 16], strides = [1, 1]} : vector<8x32xbf16> to vector<8x16xbf16>
    %12 = vector.extract_strided_slice %9 {offsets = [0, 0], sizes = [8, 16], strides = [1, 1]} : vector<8x32xbf16> to vector<8x16xbf16>
    %13 = vector.extract_strided_slice %10 {offsets = [0, 0], sizes = [8, 16], strides = [1, 1]} : vector<8x32xbf16> to vector<8x16xbf16>
    %cst_9 = arith.constant dense<0.000000e+00> : vector<8x8xf32>
    %14 = tpu.matmul %11, %12, %cst_9 {dimension_numbers = #tpu.dot_dimension_numbers<[1], [1], [0], [0], [0, 0, 1, 0], [], []>} : vector<8x16xbf16>, vector<8x16xbf16>, vector<8x8xf32> -> vector<8x8xf32>
    %cst_10 = arith.constant dense<0xFF800000> : vector<8xf32>
    %15 = vector.multi_reduction <maximumf>, %14, %cst_10 [1] : vector<8x8xf32> to vector<8xf32>
    %16 = vector.shape_cast %15 : vector<8xf32> to vector<8x1xf32>
    %17 = vector.broadcast %16 : vector<8x1xf32> to vector<8x8xf32>
    %18 = arith.subf %14, %17 : vector<8x8xf32>
    %19 = math.exp %18 : vector<8x8xf32>
    %cst_11 = arith.constant dense<0.000000e+00> : vector<8xf32>
    %20 = vector.multi_reduction <add>, %19, %cst_11 [1] : vector<8x8xf32> to vector<8xf32>
    %21 = vector.shape_cast %20 : vector<8xf32> to vector<8x1xf32>
    %22 = tpu.reciprocal %21 {approx = true} : vector<8x1xf32> -> vector<8x1xf32>
    %23 = arith.truncf %19 : vector<8x8xf32> to vector<8x8xbf16>
    %cst_12 = arith.constant dense<0.000000e+00> : vector<8x16xf32>
    %24 = tpu.matmul %23, %13, %cst_12 {dimension_numbers = #tpu.dot_dimension_numbers<[1], [0], [0], [1], [0, 0, 1, 1], [], []>} : vector<8x8xbf16>, vector<8x16xbf16>, vector<8x16xf32> -> vector<8x16xf32>
    %25 = vector.broadcast %22 : vector<8x1xf32> to vector<8x16xf32>
    %26 = arith.mulf %24, %25 : vector<8x16xf32>
    %27 = arith.truncf %26 : vector<8x16xf32> to vector<8x16xbf16>
    %c0_13 = arith.constant 0 : index
    %c0_14 = arith.constant 0 : index
    %28 = vector.load %arg12[%c0_13, %c0_14] : memref<8x32xbf16, #tpu.memory_space<vmem>>, vector<8x16xbf16>
    tpu.vector_store %arg12[%c0_13, %c0_14], %27 {strides = array<i32>} : memref<8x32xbf16, #tpu.memory_space<vmem>>, vector<8x16xbf16>,
    %29 = vector.extract_strided_slice %8 {offsets = [0, 16], sizes = [8, 16], strides = [1, 1]} : vector<8x32xbf16> to vector<8x16xbf16>
    %30 = vector.extract_strided_slice %9 {offsets = [0, 16], sizes = [8, 16], strides = [1, 1]} : vector<8x32xbf16> to vector<8x16xbf16>
    %31 = vector.extract_strided_slice %10 {offsets = [0, 16], sizes = [8, 16], strides = [1, 1]} : vector<8x32xbf16> to vector<8x16xbf16>
    %cst_15 = arith.constant dense<0.000000e+00> : vector<8x8xf32>
    %32 = tpu.matmul %29, %30, %cst_15 {dimension_numbers = #tpu.dot_dimension_numbers<[1], [1], [0], [0], [0, 0, 1, 0], [], []>} : vector<8x16xbf16>, vector<8x16xbf16>, vector<8x8xf32> -> vector<8x8xf32>
    %cst_16 = arith.constant dense<0xFF800000> : vector<8xf32>
    %33 = vector.multi_reduction <maximumf>, %32, %cst_16 [1] : vector<8x8xf32> to vector<8xf32>
    %34 = vector.shape_cast %33 : vector<8xf32> to vector<8x1xf32>
    %35 = vector.broadcast %34 : vector<8x1xf32> to vector<8x8xf32>
    %36 = arith.subf %32, %35 : vector<8x8xf32>
    %37 = math.exp %36 : vector<8x8xf32>
    %cst_17 = arith.constant dense<0.000000e+00> : vector<8xf32>
    %38 = vector.multi_reduction <add>, %37, %cst_17 [1] : vector<8x8xf32> to vector<8xf32>
    %39 = vector.shape_cast %38 : vector<8xf32> to vector<8x1xf32>
    %40 = tpu.reciprocal %39 {approx = true} : vector<8x1xf32> -> vector<8x1xf32>
    %41 = arith.truncf %37 : vector<8x8xf32> to vector<8x8xbf16>
    %cst_18 = arith.constant dense<0.000000e+00> : vector<8x16xf32>
    %42 = tpu.matmul %41, %31, %cst_18 {dimension_numbers = #tpu.dot_dimension_numbers<[1], [0], [0], [1], [0, 0, 1, 1], [], []>} : vector<8x8xbf16>, vector<8x16xbf16>, vector<8x16xf32> -> vector<8x16xf32>
    %43 = vector.broadcast %40 : vector<8x1xf32> to vector<8x16xf32>
    %44 = arith.mulf %42, %43 : vector<8x16xf32>
    %45 = arith.truncf %44 : vector<8x16xf32> to vector<8x16xbf16>
    %c0_19 = arith.constant 0 : index
    %c16 = arith.constant 16 : index
    %46 = vector.load %arg12[%c0_19, %c16] : memref<8x32xbf16, #tpu.memory_space<vmem>>, vector<8x16xbf16>
    tpu.vector_store %arg12[%c0_19, %c16], %45 {strides = array<i32>} : memref<8x32xbf16, #tpu.memory_space<vmem>>, vector<8x16xbf16>,
    %c0_20 = arith.constant 0 : index
    %c0_21 = arith.constant 0 : index
    %47 = vector.load %arg12[%c0_20, %c0_21] : memref<8x32xbf16, #tpu.memory_space<vmem>>, vector<8x32xbf16>
    %c0_22 = arith.constant 0 : index
    %c0_23 = arith.constant 0 : index
    %48 = vector.load %arg7[%c0_22, %c0_23] : memref<32x32xbf16, #tpu.memory_space<vmem>>, vector<32x32xbf16>
    %cst_24 = arith.constant dense<0.000000e+00> : vector<8x32xf32>
    %49 = tpu.matmul %47, %48, %cst_24 {dimension_numbers = #tpu.dot_dimension_numbers<[1], [0], [0], [1], [0, 0, 1, 1], [], []>} : vector<8x32xbf16>, vector<32x32xbf16>, vector<8x32xf32> -> vector<8x32xf32>
    %c0_25 = arith.constant 0 : index
    %c0_26 = arith.constant 0 : index
    %50 = vector.load %arg8[%c0_25, %c0_26] : memref<1x32xf32, #tpu.memory_space<vmem>>, vector<1x32xf32>
    %51 = vector.broadcast %50 : vector<1x32xf32> to vector<8x32xf32>
    %52 = arith.addf %49, %51 : vector<8x32xf32>
    %c0_27 = arith.constant 0 : index
    %c0_28 = arith.constant 0 : index
    %c0_29 = arith.constant 0 : index
    %53 = vector.load %arg9[%c0_27, %c0_28, %c0_29] : memref<1x8x32xf32, #tpu.memory_space<vmem>>, vector<1x8x32xf32>
    %54 = vector.shape_cast %53 : vector<1x8x32xf32> to vector<8x32xf32>
    %55 = vector.shape_cast %52 : vector<8x32xf32> to vector<1x8x32xf32>
    tpu.vector_store %arg9[%c0_27, %c0_28, %c0_29], %55 {strides = array<i32>} : memref<1x8x32xf32, #tpu.memory_space<vmem>>, vector<1x8x32xf32>,
    return
  }
  func.func @transform_0(%arg0: i32, %arg1: i32) -> (i32, i32, i32) {
    %c0_i32 = arith.constant 0 : i32
    %c0_i32_0 = arith.constant 0 : i32
    return %arg0, %arg1, %c0_i32 : i32, i32, i32
  }
  func.func @transform_1(%arg0: i32, %arg1: i32) -> (i32, i32, i32) {
    %c0_i32 = arith.constant 0 : i32
    %c0_i32_0 = arith.constant 0 : i32
    %c0_i32_1 = arith.constant 0 : i32
    return %arg0, %c0_i32, %c0_i32_0 : i32, i32, i32
  }
  func.func @transform_2(%arg0: i32, %arg1: i32) -> (i32, i32) {
    %c0_i32 = arith.constant 0 : i32
    %c0_i32_0 = arith.constant 0 : i32
    %c0_i32_1 = arith.constant 0 : i32
    return %c0_i32, %c0_i32_0 : i32, i32
  }
  func.func @transform_3(%arg0: i32, %arg1: i32) -> (i32, i32) {
    %c0_i32 = arith.constant 0 : i32
    %c0_i32_0 = arith.constant 0 : i32
    %c0_i32_1 = arith.constant 0 : i32
    return %c0_i32, %c0_i32_0 : i32, i32
  }
  func.func @transform_4(%arg0: i32, %arg1: i32) -> (i32, i32) {
    %c0_i32 = arith.constant 0 : i32
    %c0_i32_0 = arith.constant 0 : i32
    %c0_i32_1 = arith.constant 0 : i32
    return %c0_i32, %c0_i32_0 : i32, i32
  }
  func.func @transform_5(%arg0: i32, %arg1: i32) -> (i32, i32) {
    %c0_i32 = arith.constant 0 : i32
    %c0_i32_0 = arith.constant 0 : i32
    %c0_i32_1 = arith.constant 0 : i32
    return %c0_i32, %c0_i32_0 : i32, i32
  }
  func.func @transform_6(%arg0: i32, %arg1: i32) -> (i32, i32) {
    %c0_i32 = arith.constant 0 : i32
    %c0_i32_0 = arith.constant 0 : i32
    %c0_i32_1 = arith.constant 0 : i32
    return %c0_i32, %c0_i32_0 : i32, i32
  }
  func.func @transform_7(%arg0: i32, %arg1: i32) -> (i32, i32, i32) {
    %c0_i32 = arith.constant 0 : i32
    %c0_i32_0 = arith.constant 0 : i32
    return %arg0, %arg1, %c0_i32 : i32, i32, i32
  }
}

</mosaic_0001>

<llo_original>
// kernel: tpu_custom_call.1
$region0: #{tpu_custom_call.1}
  #allocation0 [shape = 'u32[]', space=smem, size = 0x4, offset = 0x4, fixed_abs, tag = 'smem constant byte address 0x4 - core index']
  #allocation1 [shape = 'u32[144,128]{1,0:T(1,128)}', space=vmem, size = 0x12000, scoped, tag = 'internal scratch']
  #allocation2 [shape = 'bf16[8,32]{1,0:T(8,128)(2,1)}', space=vmem, size = 0x800, scoped, tag = 'scratch operand']
  #allocation3 [shape = 'bf16[8,32]{1,0:T(8,128)(2,1)}', space=vmem, size = 0x800, scoped, tag = 'scratch operand']
  #allocation4 [shape = 'bf16[8,32]{1,0:T(8,128)(2,1)}', space=vmem, size = 0x800, scoped, tag = 'scratch operand']
  %s0 = inlined_call_operand.hbm [shape: f32[2,8,32], index: 0, kind: input, shape index: {}]
  %s1 = inlined_call_operand.hbm [shape: f32[2,8,32], index: 1, kind: input, shape index: {}]
  %s2 = inlined_call_operand.hbm [shape: bf16[32,32], index: 2, kind: input, shape index: {}]
  %s3 = inlined_call_operand.hbm [shape: bf16[32,32], index: 3, kind: input, shape index: {}]
  %s4 = inlined_call_operand.hbm [shape: bf16[32,32], index: 4, kind: input, shape index: {}]
  %s5 = inlined_call_operand.hbm [shape: bf16[32,32], index: 5, kind: input, shape index: {}]
  %s6 = inlined_call_operand.vmem [shape: f32[1,32], index: 6, kind: input, shape index: {}]
  %s7 = inlined_call_operand.hbm [shape: f32[2,8,32], index: 7, kind: output, shape index: {}]
  %s8 = sld [smem:[#allocation0]]
  $region89: #{tpu_custom_call.1} parent=0
    _
  %s10 = ssub.s32 1, %s8
  %s11 = scalar_select 0, %s10, %s8
  $region1: #{tpu_custom_call.1} parent=0
    #allocation5 [shape = 'u8[8192]{0}', space=vmem, size = 0x2000, scoped, tag = 'input window, operand 0']
    #allocation6 [shape = 's32[2]{0}', space=sflag, size = 0x8, scoped, tag = 'scoped memory for tpu_custom_call.1']
    #allocation7 [shape = 's32[2]{0}', space=sflag, size = 0x8, scoped, tag = 'scoped memory for tpu_custom_call.1']
    #allocation8 [shape = 'u8[8192]{0}', space=vmem, size = 0x2000, scoped, tag = 'input window, operand 1']
    #allocation9 [shape = 's32[2]{0}', space=sflag, size = 0x8, scoped, tag = 'scoped memory for tpu_custom_call.1']
    #allocation10 [shape = 'u8[8192]{0}', space=vmem, size = 0x2000, scoped, tag = 'input window, operand 2, single buffered']
    #allocation11 [shape = 'u8[8192]{0}', space=vmem, size = 0x2000, scoped, tag = 'input window, operand 3, single buffered']
    #allocation12 [shape = 's32[1]{0}', space=sflag, size = 0x4, scoped, tag = 'scoped memory for tpu_custom_call.1']
    #allocation13 [shape = 'u8[8192]{0}', space=vmem, size = 0x2000, scoped, tag = 'input window, operand 4, single buffered']
    #allocation14 [shape = 'u8[8192]{0}', space=vmem, size = 0x2000, scoped, tag = 'input window, operand 5, single buffered']
    #allocation15 [shape = 's32[1]{0}', space=sflag, size = 0x4, scoped, tag = 'scoped memory for tpu_custom_call.1']
    #allocation16 [shape = 'u8[8192]{0}', space=vmem, size = 0x2000, scoped, tag = 'output window, operand 0']
    %12 = vsyncpa [#allocation6], 0
    %s13 = scalar_lea.sflag [#allocation6], 1
    %14 = vsyncpa %s13, 0
    %15 = vsyncpa [#allocation9], 0
    %s16 = scalar_lea.sflag [#allocation9], 1
    %17 = vsyncpa %s16, 0
    %18 = vsyncpa [#allocation12], 0
    %19 = vsyncpa [#allocation15], 0
    %20 = vsyncpa [#allocation7], 0
    %s21 = scalar_lea.sflag [#allocation7], 1
    %22 = vsyncpa %s21, 0
    loop: start=0, step=1, limit=4
    $region2: #{tpu_custom_call.1} parent=1 // loop_pre_header
      _
    $region3: #{tpu_custom_call.1} parent=1 // loop_header
      %s24 = sphi 0, %s28
      %p25 = scmp.ge.s32.totalorder %s24, 4
      %s31 = sphi 0, %s43
      %s32 = sphi 0, %s39
      %s33 = sphi 0, %s31
      %s34 = sphi 0, %s32
      %s35 = sphi 0, %s33
      %s36 = sphi 0, %s34
      %s48 = sphi 0, %s50
      %s51 = sphi 0, %s48
      %s52 = sphi 0, %s51
      %s68 = sphi 0, %s52
      %s74 = sphi 0, %s76
      %s77 = sphi 0, %s74
      %s78 = sphi 0, %s77
      %s94 = sphi 0, %s78
      %s98 = sphi 0, %s98
      %s100 = sphi 0, %s98
      %s101 = sphi 0, %s100
      %s115 = sphi 0, %s101
      %s119 = sphi 0, %s119
      %s121 = sphi 0, %s119
      %s122 = sphi 0, %s121
      %s136 = sphi 0, %s122
      %s140 = sphi 0, %s140
      %s142 = sphi 0, %s140
      %s143 = sphi 0, %s142
      %s157 = sphi 0, %s143
      %s161 = sphi 0, %s161
      %s163 = sphi 0, %s161
      %s164 = sphi 0, %s163
      %s178 = sphi 0, %s164
      %s182 = sphi 0, %s182
      %s184 = sphi 0, %s182
      %s185 = sphi 0, %s184
      %s199 = sphi 0, %s185
      %s207 = sphi 0, %s209
      %s210 = sphi 0, %s207
      %s211 = sphi 0, %s210
      %s227 = sphi 0, %s211
    $region4: #{tpu_custom_call.1} parent=1 // loop_header_branch
      %27 = sbr.rel (%p25) target = $region8
    $region5: #{tpu_custom_call.1} parent=1 // loop_body
      %s29 = ssub.s32 %s24, 1
      %s30 = ssub.s32 %s24, 2
      %s37 = sadd.s32 1, %s32
      %p38 = scmp.ge.s32.totalorder %s37, 1
      %s39 = scalar_select %p38, 0, %s37
      %s40 = sadd.s32 1, %s31
      %s41 = scalar_select %p38, %s40, %s31
      %p42 = scmp.ge.s32.totalorder %s41, 2
      %s43 = scalar_select %p42, 0, %s41
      %s44 = ssub.s32 %s31, %s43
      %s45 = ssub.s32 %s32, %s39
      %s46 = sor.u32 %s44, %s45
      %p47 = scmp.eq.s32.totalorder %s46, 0
      %s49 = sadd.s32 %s48, 1
      %s50 = scalar_select %p47, %s48, %s49
      %p53 = pneg %p47
      %p54 = scmp.eq.s32.totalorder %s24, 1
      %p55 = por %p53, %p54
      %p56 = scmp.ne.s32.totalorder %s48, %s51
      %p57 = scmp.eq.s32.totalorder %s24, 0
      %p58 = por %p56, %p57
      %p59 = scmp.ne.s32.totalorder %s48, %s51
      %p60 = scmp.eq.s32.totalorder %s29, 1
      %p61 = por %p59, %p60
      %p62 = scmp.ne.s32.totalorder %s51, %s52
      %p63 = scmp.eq.s32.totalorder %s29, 0
      %p64 = por %p62, %p63
      %p65 = scmp.ne.s32.totalorder %s51, %s52
      %p66 = scmp.eq.s32.totalorder %s30, 1
      %p67 = por %p65, %p66
      %p69 = scmp.ne.s32.totalorder %s52, %s68
      %p70 = scmp.eq.s32.totalorder %s30, 0
      %p71 = por %p69, %p70
      %s72 = ssub.s32 %s31, %s43
      %p73 = scmp.eq.s32.totalorder %s72, 0
      %s75 = sadd.s32 %s74, 1
      %s76 = scalar_select %p73, %s74, %s75
      %p79 = pneg %p73
      %p80 = scmp.eq.s32.totalorder %s24, 1
      %p81 = por %p79, %p80
      %p82 = scmp.ne.s32.totalorder %s74, %s77
      %p83 = scmp.eq.s32.totalorder %s24, 0
      %p84 = por %p82, %p83
      %p85 = scmp.ne.s32.totalorder %s74, %s77
      %p86 = scmp.eq.s32.totalorder %s29, 1
      %p87 = por %p85, %p86
      %p88 = scmp.ne.s32.totalorder %s77, %s78
      %p89 = scmp.eq.s32.totalorder %s29, 0
      %p90 = por %p88, %p89
      %p91 = scmp.ne.s32.totalorder %s77, %s78
      %p92 = scmp.eq.s32.totalorder %s30, 1
      %p93 = por %p91, %p92
      %p95 = scmp.ne.s32.totalorder %s78, %s94
      %p96 = scmp.eq.s32.totalorder %s30, 0
      %p97 = por %p95, %p96
      %s99 = sadd.s32 %s98, 1
      %p102 = scmp.eq.s32.totalorder %s24, 1
      %p103 = scmp.ne.s32.totalorder %s98, %s100
      %p104 = scmp.eq.s32.totalorder %s24, 0
      %p105 = por %p103, %p104
      %p106 = scmp.ne.s32.totalorder %s98, %s100
      %p107 = scmp.eq.s32.totalorder %s29, 1
      %p108 = por %p106, %p107
      %p109 = scmp.ne.s32.totalorder %s100, %s101
      %p110 = scmp.eq.s32.totalorder %s29, 0
      %p111 = por %p109, %p110
      %p112 = scmp.ne.s32.totalorder %s100, %s101
      %p113 = scmp.eq.s32.totalorder %s30, 1
      %p114 = por %p112, %p113
      %p116 = scmp.ne.s32.totalorder %s101, %s115
      %p117 = scmp.eq.s32.totalorder %s30, 0
      %p118 = por %p116, %p117
      %s120 = sadd.s32 %s119, 1
      %p123 = scmp.eq.s32.totalorder %s24, 1
      %p124 = scmp.ne.s32.totalorder %s119, %s121
      %p125 = scmp.eq.s32.totalorder %s24, 0
      %p126 = por %p124, %p125
      %p127 = scmp.ne.s32.totalorder %s119, %s121
      %p128 = scmp.eq.s32.totalorder %s29, 1
      %p129 = por %p127, %p128
      %p130 = scmp.ne.s32.totalorder %s121, %s122
      %p131 = scmp.eq.s32.totalorder %s29, 0
      %p132 = por %p130, %p131
      %p133 = scmp.ne.s32.totalorder %s121, %s122
      %p134 = scmp.eq.s32.totalorder %s30, 1
      %p135 = por %p133, %p134
      %p137 = scmp.ne.s32.totalorder %s122, %s136
      %p138 = scmp.eq.s32.totalorder %s30, 0
      %p139 = por %p137, %p138
      %s141 = sadd.s32 %s140, 1
      %p144 = scmp.eq.s32.totalorder %s24, 1
      %p145 = scmp.ne.s32.totalorder %s140, %s142
      %p146 = scmp.eq.s32.totalorder %s24, 0
      %p147 = por %p145, %p146
      %p148 = scmp.ne.s32.totalorder %s140, %s142
      %p149 = scmp.eq.s32.totalorder %s29, 1
      %p150 = por %p148, %p149
      %p151 = scmp.ne.s32.totalorder %s142, %s143
      %p152 = scmp.eq.s32.totalorder %s29, 0
      %p153 = por %p151, %p152
      %p154 = scmp.ne.s32.totalorder %s142, %s143
      %p155 = scmp.eq.s32.totalorder %s30, 1
      %p156 = por %p154, %p155
      %p158 = scmp.ne.s32.totalorder %s143, %s157
      %p159 = scmp.eq.s32.totalorder %s30, 0
      %p160 = por %p158, %p159
      %s162 = sadd.s32 %s161, 1
      %p165 = scmp.eq.s32.totalorder %s24, 1
      %p166 = scmp.ne.s32.totalorder %s161, %s163
      %p167 = scmp.eq.s32.totalorder %s24, 0
      %p168 = por %p166, %p167
      %p169 = scmp.ne.s32.totalorder %s161, %s163
      %p170 = scmp.eq.s32.totalorder %s29, 1
      %p171 = por %p169, %p170
      %p172 = scmp.ne.s32.totalorder %s163, %s164
      %p173 = scmp.eq.s32.totalorder %s29, 0
      %p174 = por %p172, %p173
      %p175 = scmp.ne.s32.totalorder %s163, %s164
      %p176 = scmp.eq.s32.totalorder %s30, 1
      %p177 = por %p175, %p176
      %p179 = scmp.ne.s32.totalorder %s164, %s178
      %p180 = scmp.eq.s32.totalorder %s30, 0
      %p181 = por %p179, %p180
      %s183 = sadd.s32 %s182, 1
      %p186 = scmp.eq.s32.totalorder %s24, 1
      %p187 = scmp.ne.s32.totalorder %s182, %s184
      %p188 = scmp.eq.s32.totalorder %s24, 0
      %p189 = por %p187, %p188
      %p190 = scmp.ne.s32.totalorder %s182, %s184
      %p191 = scmp.eq.s32.totalorder %s29, 1
      %p192 = por %p190, %p191
      %p193 = scmp.ne.s32.totalorder %s184, %s185
      %p194 = scmp.eq.s32.totalorder %s29, 0
      %p195 = por %p193, %p194
      %p196 = scmp.ne.s32.totalorder %s184, %s185
      %p197 = scmp.eq.s32.totalorder %s30, 1
      %p198 = por %p196, %p197
      %p200 = scmp.ne.s32.totalorder %s185, %s199
      %p201 = scmp.eq.s32.totalorder %s30, 0
      %p202 = por %p200, %p201
      %s203 = ssub.s32 %s31, %s43
      %s204 = ssub.s32 %s32, %s39
      %s205 = sor.u32 %s203, %s204
      %p206 = scmp.eq.s32.totalorder %s205, 0
      %s208 = sadd.s32 %s207, 1
      %s209 = scalar_select %p206, %s207, %s208
      %p212 = pneg %p206
      %p213 = scmp.eq.s32.totalorder %s24, 1
      %p214 = por %p212, %p213
      %p215 = scmp.ne.s32.totalorder %s207, %s210
      %p216 = scmp.eq.s32.totalorder %s24, 0
      %p217 = por %p215, %p216
      %p218 = scmp.ne.s32.totalorder %s207, %s210
      %p219 = scmp.eq.s32.totalorder %s29, 1
      %p220 = por %p218, %p219
      %p221 = scmp.ne.s32.totalorder %s210, %s211
      %p222 = scmp.eq.s32.totalorder %s29, 0
      %p223 = por %p221, %p222
      %p224 = scmp.ne.s32.totalorder %s210, %s211
      %p225 = scmp.eq.s32.totalorder %s30, 1
      %p226 = por %p224, %p225
      %p228 = scmp.ne.s32.totalorder %s211, %s227
      %p229 = scmp.eq.s32.totalorder %s30, 0
      %p230 = por %p228, %p229
      %p231 = scmp.le.s32.totalorder 1, %s24
      %p232 = scmp.lt.s32.totalorder %s24, 3
      %p233 = pnand %p231, %p232
      %p234 = pneg %p233
      // Predicated region
      $region9: #{tpu_custom_call.1} parent=5 // pred_check
        _
      $region10: #{tpu_custom_call.1} parent=5 // pred_check_branch
        %236 = sbr.rel (%p233) target = $region12
      $region11: #{tpu_custom_call.1} parent=5 // pred_region
        %s237 = ssub.s32 %s24, 1
        // Predicated region
        $region13: #{tpu_custom_call.1} parent=11 // pred_check
          %p238 = pneg %p111
        $region14: #{tpu_custom_call.1} parent=11 // pred_check_branch
          %240 = sbr.rel (%p238) target = $region16
        $region15: #{tpu_custom_call.1} parent=11 // pred_region
          %s242 = ssub.s32 256, 256
          %243 = vsyncadd [#allocation9], %s242
          %s244 = sshll.u32 [#allocation10], 4
          %s245 = int_to_ptr.vmem [resolvable:$true] %s244
          %250 = dma.hbm_to_vmem [thread:$0]  %s2, 256, %s245, [#allocation9], 64, 64, 4
        $region16: #{tpu_custom_call.1} parent=11 // pred_fallthru
          _
        // Predicated region
        $region17: #{tpu_custom_call.1} parent=11 // pred_check
          %p251 = pneg %p132
        $region18: #{tpu_custom_call.1} parent=11 // pred_check_branch
          %253 = sbr.rel (%p251) target = $region20
        $region19: #{tpu_custom_call.1} parent=11 // pred_region
          %s255 = ssub.s32 256, 256
          %256 = vsyncadd [#allocation12], %s255
          %s257 = sshll.u32 [#allocation11], 4
          %s258 = int_to_ptr.vmem [resolvable:$true] %s257
          %263 = dma.hbm_to_vmem [thread:$0]  %s3, 256, %s258, [#allocation12], 64, 64, 4
        $region20: #{tpu_custom_call.1} parent=11 // pred_fallthru
          _
        // Predicated region
        $region21: #{tpu_custom_call.1} parent=11 // pred_check
          %p264 = pneg %p153
        $region22: #{tpu_custom_call.1} parent=11 // pred_check_branch
          %266 = sbr.rel (%p264) target = $region24
        $region23: #{tpu_custom_call.1} parent=11 // pred_region
          %s268 = ssub.s32 256, 256
          %269 = vsyncadd [#allocation12], %s268
          %s270 = sshll.u32 [#allocation13], 4
          %s271 = int_to_ptr.vmem [resolvable:$true] %s270
          %276 = dma.hbm_to_vmem [thread:$0]  %s4, 256, %s271, [#allocation12], 64, 64, 4
        $region24: #{tpu_custom_call.1} parent=11 // pred_fallthru
          _
        // Predicated region
        $region25: #{tpu_custom_call.1} parent=11 // pred_check
          %p277 = pneg %p174
        $region26: #{tpu_custom_call.1} parent=11 // pred_check_branch
          %279 = sbr.rel (%p277) target = $region28
        $region27: #{tpu_custom_call.1} parent=11 // pred_region
          %s281 = ssub.s32 256, 256
          %282 = vsyncadd [#allocation15], %s281
          %s283 = sshll.u32 [#allocation14], 4
          %s284 = int_to_ptr.vmem [resolvable:$true] %s283
          %289 = dma.hbm_to_vmem [thread:$0]  %s5, 256, %s284, [#allocation15], 64, 64, 4
        $region28: #{tpu_custom_call.1} parent=11 // pred_fallthru
          _
        // Predicated region
        $region29: #{tpu_custom_call.1} parent=11 // pred_check
          %p290 = pneg %p195
        $region30: #{tpu_custom_call.1} parent=11 // pred_check_branch
          %292 = sbr.rel (%p290) target = $region32
        $region31: #{tpu_custom_call.1} parent=11 // pred_region
          _
        $region32: #{tpu_custom_call.1} parent=11 // pred_fallthru
          _
      $region12: #{tpu_custom_call.1} parent=5 // pred_fallthru
        _
      %p293 = scmp.lt.s32.totalorder %s24, 2
      // Predicated region
      $region33: #{tpu_custom_call.1} parent=5 // pred_check
        %p294 = pneg %p293
      $region34: #{tpu_custom_call.1} parent=5 // pred_check_branch
        %296 = sbr.rel (%p294) target = $region36
      $region35: #{tpu_custom_call.1} parent=5 // pred_region
        // Predicated region
        $region37: #{tpu_custom_call.1} parent=35 // pred_check
          %p297 = pneg %p58
        $region38: #{tpu_custom_call.1} parent=35 // pred_check_branch
          %299 = sbr.rel (%p297) target = $region40
        $region39: #{tpu_custom_call.1} parent=35 // pred_region
          %s300 = sand.u32 %s48, 1
          %s301 = scalar_lea.sflag [#allocation6], %s300
          %s302 = sand.u32 %s48, 1
          %s303 = smul.addr %s302, 8
          %s304 = scalar_lea.vmem [#allocation5], %s303
          %s306 = ssub.s32 128, 128
          %307 = vsyncadd %s301, %s306
          %s308 = sadd.s32 %s32, %s31
          %s309 = smul.addr %s308, 128
          %s310 = scalar_lea.hbm %s0, %s309
          %s312 = sshll.u32 %s304, 4
          %s313 = int_to_ptr.vmem [resolvable:$true] %s312
          %315 = dma.hbm_to_vmem [thread:$0]  %s310, 128, %s313, %s301
        $region40: #{tpu_custom_call.1} parent=35 // pred_fallthru
          _
        // Predicated region
        $region41: #{tpu_custom_call.1} parent=35 // pred_check
          %p316 = pneg %p84
        $region42: #{tpu_custom_call.1} parent=35 // pred_check_branch
          %318 = sbr.rel (%p316) target = $region44
        $region43: #{tpu_custom_call.1} parent=35 // pred_region
          %s319 = sand.u32 %s24, 1
          %s320 = scalar_lea.sflag [#allocation9], %s319
          %s321 = sand.u32 %s74, 1
          %s322 = smul.addr %s321, 8
          %s323 = scalar_lea.vmem [#allocation8], %s322
          %s325 = ssub.s32 128, 128
          %326 = vsyncadd %s320, %s325
          %s327 = smul.addr %s31, 128
          %s328 = scalar_lea.hbm %s1, %s327
          %s330 = sshll.u32 %s323, 4
          %s331 = int_to_ptr.vmem [resolvable:$true] %s330
          %333 = dma.hbm_to_vmem [thread:$0]  %s328, 128, %s331, %s320
        $region44: #{tpu_custom_call.1} parent=35 // pred_fallthru
          _
      $region36: #{tpu_custom_call.1} parent=5 // pred_fallthru
        _
      %p334 = scmp.le.s32.totalorder 1, %s24
      %p335 = scmp.lt.s32.totalorder %s24, 3
      %p336 = pnand %p334, %p335
      %p337 = pneg %p336
      // Predicated region
      $region45: #{tpu_custom_call.1} parent=5 // pred_check
        _
      $region46: #{tpu_custom_call.1} parent=5 // pred_check_branch
        %339 = sbr.rel (%p336) target = $region48
      $region47: #{tpu_custom_call.1} parent=5 // pred_region
        %s340 = ssub.s32 %s24, 1
        %s341 = sand.u32 %s51, 1
        %s342 = scalar_lea.sflag [#allocation6], %s341
        %s343 = sand.u32 %s51, 1
        %s344 = smul.addr %s343, 8
        %s345 = scalar_lea.vmem [#allocation5], %s344
        // Predicated region
        $region49: #{tpu_custom_call.1} parent=47 // pred_check
          %p346 = pneg %p64
        $region50: #{tpu_custom_call.1} parent=47 // pred_check_branch
          %348 = sbr.rel (%p346) target = $region52
        $region51: #{tpu_custom_call.1} parent=47 // pred_region
          %349 = dma.done %s342, 128
        $region52: #{tpu_custom_call.1} parent=47 // pred_fallthru
          _
        %s350 = sand.u32 %s29, 1
        %s351 = scalar_lea.sflag [#allocation9], %s350
        %s352 = sand.u32 %s77, 1
        %s353 = smul.addr %s352, 8
        %s354 = scalar_lea.vmem [#allocation8], %s353
        // Predicated region
        $region53: #{tpu_custom_call.1} parent=47 // pred_check
          %p355 = pneg %p90
        $region54: #{tpu_custom_call.1} parent=47 // pred_check_branch
          %357 = sbr.rel (%p355) target = $region56
        $region55: #{tpu_custom_call.1} parent=47 // pred_region
          %358 = dma.done %s351, 128
        $region56: #{tpu_custom_call.1} parent=47 // pred_fallthru
          _
        // Predicated region
        $region57: #{tpu_custom_call.1} parent=47 // pred_check
          %p359 = pneg %p111
        $region58: #{tpu_custom_call.1} parent=47 // pred_check_branch
          %361 = sbr.rel (%p359) target = $region60
        $region59: #{tpu_custom_call.1} parent=47 // pred_region
          %362 = dma.done [#allocation9], 256
        $region60: #{tpu_custom_call.1} parent=47 // pred_fallthru
          _
        // Predicated region
        $region61: #{tpu_custom_call.1} parent=47 // pred_check
          %p363 = pneg %p132
        $region62: #{tpu_custom_call.1} parent=47 // pred_check_branch
          %365 = sbr.rel (%p363) target = $region64
        $region63: #{tpu_custom_call.1} parent=47 // pred_region
          %366 = dma.done [#allocation12], 256
        $region64: #{tpu_custom_call.1} parent=47 // pred_fallthru
          _
        // Predicated region
        $region65: #{tpu_custom_call.1} parent=47 // pred_check
          %p367 = pneg %p153
        $region66: #{tpu_custom_call.1} parent=47 // pred_check_branch
          %369 = sbr.rel (%p367) target = $region68
        $region67: #{tpu_custom_call.1} parent=47 // pred_region
          %370 = dma.done [#allocation12], 256
        $region68: #{tpu_custom_call.1} parent=47 // pred_fallthru
          _
        // Predicated region
        $region69: #{tpu_custom_call.1} parent=47 // pred_check
          %p371 = pneg %p174
        $region70: #{tpu_custom_call.1} parent=47 // pred_check_branch
          %373 = sbr.rel (%p371) target = $region72
        $region71: #{tpu_custom_call.1} parent=47 // pred_region
          %374 = dma.done [#allocation15], 256
        $region72: #{tpu_custom_call.1} parent=47 // pred_fallthru
          _
        %s375 = sand.u32 %s51, 1
        %s376 = scalar_lea.sflag [#allocation6], %s375
        %s377 = sand.u32 %s51, 1
        %s378 = smul.addr %s377, 8
        %s379 = scalar_lea.vmem [#allocation5], %s378
        %p380 = pneg %p64
        %p381 = pneg %p61
        %s382 = sand.u32 %s29, 1
        %s383 = scalar_lea.sflag [#allocation9], %s382
        %s384 = sand.u32 %s77, 1
        %s385 = smul.addr %s384, 8
        %s386 = scalar_lea.vmem [#allocation8], %s385
        %p387 = pneg %p90
        %p388 = pneg %p87
        %p389 = pneg %p111
        %p390 = pneg %p108
        %p391 = pneg %p132
        %p392 = pneg %p129
        %p393 = pneg %p153
        %p394 = pneg %p150
        %p395 = pneg %p174
        %p396 = pneg %p171
        %p397 = pneg %p195
        %p398 = pneg %p192
        %p399 = pneg %p223
        %p400 = pneg %p220
        %s401 = sand.u32 %s210, 1
        %s402 = scalar_lea.sflag [#allocation7], %s401
        %s403 = sand.u32 %s210, 1
        %s404 = smul.addr %s403, 8
        %s405 = scalar_lea.vmem [#allocation16], %s404
        %p407 = scmp.eq.s32.totalorder %s34, 0
        // Predicated region
        $region73: #{tpu_custom_call.1} parent=47 // pred_check
          %p408 = pneg %p407
        $region74: #{tpu_custom_call.1} parent=47 // pred_check_branch
          %410 = sbr.rel (%p408) target = $region76
        $region75: #{tpu_custom_call.1} parent=47 // pred_region
          %v411 = vld [vmem:[%s354] sm:$0xff]
          %v412 = vpack.c.bf16 %v411, %v411
          %v413 = vld [vmem:[#allocation11] sm:$0xf]
          %v414 = vld [vmem:[#allocation11 + $0x4] sm:$0xf]
          %v415 = vld [vmem:[#allocation11 + $0x8] sm:$0xf]
          %v416 = vld [vmem:[#allocation11 + $0xc] sm:$0xf]
          %v421 = vunpack.c.l.b16 %v413
          %v422 = vunpack.c.l.b16 %v414
          %v423 = vunpack.c.l.b16 %v415
          %v424 = vunpack.c.l.b16 %v416
          %v425 = vpack.c.b16 %v422, %v421
          %v426 = vpack.c.b16 %v424, %v423
          %vm429 = vcmask 261120
          %v431 = vsel %vm429, %v412, 0
          %433 = vmatprep.subr.bf16.mxu0 0
          %434 = vmatpush1.bf16.msra.mxu0 0
          %435 = vmatprep.subr.bf16.mxu0 0
          %436 = vmatpush1.bf16.msra.mxu0 0
          %437 = vmatprep.subr.bf16.mxu0 0
          %438 = vmatpush1.bf16.msra.mxu0 0
          %439 = vmatprep.subr.bf16.mxu0 0
          %440 = vmatpush1.bf16.msra.mxu0 0
          %441 = vmatprep.subr.bf16.mxu0 0
          %442 = vmatpush1.bf16.msra.mxu0 0
          %443 = vmatprep.subr.bf16.mxu0 0
          %444 = vmatpush1.bf16.msra.mxu0 0
          %445 = vmatprep.subr.bf16.mxu0 0
          %446 = vmatpush1.bf16.msra.mxu0 %v426
          %447 = vmatprep.subr.bf16.mxu0 0
          %448 = vmatpush1.bf16.msra.mxu0 %v425
          %449 = vmatprep.subr.bf16.mxu0 0
          %450 = vmatpush2.bf16.msra.mxu0 0
          %451 = vmatprep.subr.bf16.mxu0 0
          %452 = vmatpush2.bf16.msra.mxu0 0
          %453 = vmatprep.subr.bf16.mxu0 0
          %454 = vmatpush2.bf16.msra.mxu0 0
          %455 = vmatprep.subr.bf16.mxu0 0
          %456 = vmatpush2.bf16.msra.mxu0 0
          %457 = vmatprep.subr.bf16.mxu0 0
          %458 = vmatpush2.bf16.msra.mxu0 0
          %459 = vmatprep.subr.bf16.mxu0 0
          %460 = vmatpush2.bf16.msra.mxu0 0
          %461 = vmatprep.subr.bf16.mxu0 0
          %462 = vmatpush2.bf16.msra.mxu0 0
          %463 = vmatprep.subr.bf16.mxu0 0
          %464 = vmatpush2.bf16.msra.mxu0 0
          %465 = vmatprep.mubr.bf16.mxu0 0
          %466 = vmatmul.mubr.bf16.gmra.mxu0 %v431
          %v467 = vpop.f32.mrf.mxu0
          %v468 = vadd.f32 0.0, %v467
          %v469 = vpop.f32.mrf.mxu0
          %v470 = vpop.f32.mrf.mxu0
          %v471 = vpop.f32.mrf.mxu0
          %472 = vdwg.mxu0
          %v473 = vpack.c.bf16 %v468, %v468
          %vm474 = vcmask 257024
          %475 = vst.msk [vmem:[#allocation2] sm:$0xf] %vm474, %v473
          %v476 = vld [vmem:[#allocation13] sm:$0xf]
          %v477 = vld [vmem:[#allocation13 + $0x4] sm:$0xf]
          %v478 = vld [vmem:[#allocation13 + $0x8] sm:$0xf]
          %v479 = vld [vmem:[#allocation13 + $0xc] sm:$0xf]
          %v484 = vunpack.c.l.b16 %v476
          %v485 = vunpack.c.l.b16 %v477
          %v486 = vunpack.c.l.b16 %v478
          %v487 = vunpack.c.l.b16 %v479
          %v488 = vpack.c.b16 %v485, %v484
          %v489 = vpack.c.b16 %v487, %v486
          %492 = vmatprep.subr.bf16.mxu0 0
          %493 = vmatpush1.bf16.msra.mxu0 0
          %494 = vmatprep.subr.bf16.mxu0 0
          %495 = vmatpush1.bf16.msra.mxu0 0
          %496 = vmatprep.subr.bf16.mxu0 0
          %497 = vmatpush1.bf16.msra.mxu0 0
          %498 = vmatprep.subr.bf16.mxu0 0
          %499 = vmatpush1.bf16.msra.mxu0 0
          %500 = vmatprep.subr.bf16.mxu0 0
          %501 = vmatpush1.bf16.msra.mxu0 0
          %502 = vmatprep.subr.bf16.mxu0 0
          %503 = vmatpush1.bf16.msra.mxu0 0
          %504 = vmatprep.subr.bf16.mxu0 0
          %505 = vmatpush1.bf16.msra.mxu0 %v489
          %506 = vmatprep.subr.bf16.mxu0 0
          %507 = vmatpush1.bf16.msra.mxu0 %v488
          %508 = vmatprep.subr.bf16.mxu0 0
          %509 = vmatpush2.bf16.msra.mxu0 0
          %510 = vmatprep.subr.bf16.mxu0 0
          %511 = vmatpush2.bf16.msra.mxu0 0
          %512 = vmatprep.subr.bf16.mxu0 0
          %513 = vmatpush2.bf16.msra.mxu0 0
          %514 = vmatprep.subr.bf16.mxu0 0
          %515 = vmatpush2.bf16.msra.mxu0 0
          %516 = vmatprep.subr.bf16.mxu0 0
          %517 = vmatpush2.bf16.msra.mxu0 0
          %518 = vmatprep.subr.bf16.mxu0 0
          %519 = vmatpush2.bf16.msra.mxu0 0
          %520 = vmatprep.subr.bf16.mxu0 0
          %521 = vmatpush2.bf16.msra.mxu0 0
          %522 = vmatprep.subr.bf16.mxu0 0
          %523 = vmatpush2.bf16.msra.mxu0 0
          %524 = vmatprep.mubr.bf16.mxu0 0
          %525 = vmatmul.mubr.bf16.gmra.mxu0 %v431
          %v526 = vpop.f32.mrf.mxu0
          %v527 = vadd.f32 0.0, %v526
          %v528 = vpop.f32.mrf.mxu0
          %v529 = vpop.f32.mrf.mxu0
          %v530 = vpop.f32.mrf.mxu0
          %531 = vdwg.mxu0
          %v532 = vpack.c.bf16 %v527, %v527
          %533 = vst.msk [vmem:[#allocation3] sm:$0xf] %vm474, %v532
        $region76: #{tpu_custom_call.1} parent=47 // pred_fallthru
          _
        %v534 = vld [vmem:[%s345] sm:$0xff]
        %v535 = vpack.c.bf16 %v534, %v534
        %v536 = vld [vmem:[#allocation10] sm:$0xf]
        %v537 = vld [vmem:[#allocation10 + $0x4] sm:$0xf]
        %v538 = vld [vmem:[#allocation10 + $0x8] sm:$0xf]
        %v539 = vld [vmem:[#allocation10 + $0xc] sm:$0xf]
        %v544 = vunpack.c.l.b16 %v536
        %v545 = vunpack.c.l.b16 %v537
        %v546 = vunpack.c.l.b16 %v538
        %v547 = vunpack.c.l.b16 %v539
        %v548 = vpack.c.b16 %v545, %v544
        %v549 = vpack.c.b16 %v547, %v546
        %vm552 = vcmask 261120
        %v554 = vsel %vm552, %v535, 0
        %556 = vmatprep.subr.bf16.mxu0 0
        %557 = vmatpush1.bf16.msra.mxu0 0
        %558 = vmatprep.subr.bf16.mxu0 0
        %559 = vmatpush1.bf16.msra.mxu0 0
        %560 = vmatprep.subr.bf16.mxu0 0
        %561 = vmatpush1.bf16.msra.mxu0 0
        %562 = vmatprep.subr.bf16.mxu0 0
        %563 = vmatpush1.bf16.msra.mxu0 0
        %564 = vmatprep.subr.bf16.mxu0 0
        %565 = vmatpush1.bf16.msra.mxu0 0
        %566 = vmatprep.subr.bf16.mxu0 0
        %567 = vmatpush1.bf16.msra.mxu0 0
        %568 = vmatprep.subr.bf16.mxu0 0
        %569 = vmatpush1.bf16.msra.mxu0 %v549
        %570 = vmatprep.subr.bf16.mxu0 0
        %571 = vmatpush1.bf16.msra.mxu0 %v548
        %572 = vmatprep.subr.bf16.mxu0 0
        %573 = vmatpush2.bf16.msra.mxu0 0
        %574 = vmatprep.subr.bf16.mxu0 0
        %575 = vmatpush2.bf16.msra.mxu0 0
        %576 = vmatprep.subr.bf16.mxu0 0
        %577 = vmatpush2.bf16.msra.mxu0 0
        %578 = vmatprep.subr.bf16.mxu0 0
        %579 = vmatpush2.bf16.msra.mxu0 0
        %580 = vmatprep.subr.bf16.mxu0 0
        %581 = vmatpush2.bf16.msra.mxu0 0
        %582 = vmatprep.subr.bf16.mxu0 0
        %583 = vmatpush2.bf16.msra.mxu0 0
        %584 = vmatprep.subr.bf16.mxu0 0
        %585 = vmatpush2.bf16.msra.mxu0 0
        %586 = vmatprep.subr.bf16.mxu0 0
        %587 = vmatpush2.bf16.msra.mxu0 0
        %588 = vmatprep.mubr.bf16.mxu0 0
        %589 = vmatmul.mubr.bf16.gmra.mxu0 %v554
        %v590 = vpop.f32.mrf.mxu0
        %v591 = vadd.f32 0.0, %v590
        %v592 = vpop.f32.mrf.mxu0
        %v593 = vpop.f32.mrf.mxu0
        %v594 = vpop.f32.mrf.mxu0
        %595 = vdwg.mxu0
        %v596 = vpack.c.bf16 %v591, %v591
        %v597 = vld [vmem:[#allocation2] sm:$0xf]
        %v598 = vld [vmem:[#allocation3] sm:$0xf]
        %vm599 = vcmask 130048
        %v601 = vsel %vm599, %v596, 0
        %v604 = vsel %vm599, %v597, 0
        %606 = vmatprep.subr.bf16.mxu0 0
        %607 = vmatpush1.bf16.xpose.msra.mxu0 0
        %608 = vmatprep.subr.bf16.mxu0 0
        %609 = vmatpush1.bf16.xpose.msra.mxu0 0
        %610 = vmatprep.subr.bf16.mxu0 0
        %611 = vmatpush1.bf16.xpose.msra.mxu0 0
        %612 = vmatprep.subr.bf16.mxu0 0
        %613 = vmatpush1.bf16.xpose.msra.mxu0 0
        %614 = vmatprep.subr.bf16.mxu0 0
        %615 = vmatpush1.bf16.xpose.msra.mxu0 0
        %616 = vmatprep.subr.bf16.mxu0 0
        %617 = vmatpush1.bf16.xpose.msra.mxu0 0
        %618 = vmatprep.subr.bf16.mxu0 0
        %619 = vmatpush1.bf16.xpose.msra.mxu0 0
        %620 = vmatprep.subr.bf16.mxu0 0
        %621 = vmatpush1.bf16.xpose.msra.mxu0 %v604
        %622 = vmatprep.subr.bf16.mxu0 0
        %623 = vmatpush2.bf16.xpose.msra.mxu0 0
        %624 = vmatprep.subr.bf16.mxu0 0
        %625 = vmatpush2.bf16.xpose.msra.mxu0 0
        %626 = vmatprep.subr.bf16.mxu0 0
        %627 = vmatpush2.bf16.xpose.msra.mxu0 0
        %628 = vmatprep.subr.bf16.mxu0 0
        %629 = vmatpush2.bf16.xpose.msra.mxu0 0
        %630 = vmatprep.subr.bf16.mxu0 0
        %631 = vmatpush2.bf16.xpose.msra.mxu0 0
        %632 = vmatprep.subr.bf16.mxu0 0
        %633 = vmatpush2.bf16.xpose.msra.mxu0 0
        %634 = vmatprep.subr.bf16.mxu0 0
        %635 = vmatpush2.bf16.xpose.msra.mxu0 0
        %636 = vmatprep.subr.bf16.mxu0 0
        %637 = vmatpush2.bf16.xpose.msra.mxu0 0
        %638 = vmatprep.mubr.bf16.mxu0 0
        %639 = vmatmul.mubr.bf16.gmra.mxu0 %v601
        %v640 = vpop.f32.mrf.mxu0
        %v641 = vadd.f32 0.0, %v640
        %v642 = vpop.f32.mrf.mxu0
        %v643 = vpop.f32.mrf.mxu0
        %v644 = vpop.f32.mrf.mxu0
        %645 = vdwg.mxu0
        %vm646 = vcmask 64512
        %v647 = vsel %vm646, %v641, -inf
        %648 = vmax.xlane.f32.xlu0 %v647
        %v649 = vpop.xlane.xlu0 %648
        %v650 = vsub.f32 %v641, %v649
        %v651 = vmul.f32 %v650, 1.442695
        %v652 = vpow.pop %v651
        %v653 = vsel %vm646, %v652, 0.0
        %654 = vadd.xlane.f32.xlu0 %v653
        %v655 = vpop.xlane.xlu0 %654
        %v656 = vrcp.pop %v655
        %v657 = vpack.c.bf16 %v652, %v652
        %v659 = vsel %vm646, %v657, 0
        %vm661 = vcmask 1043456
        %v663 = vsel %vm661, %v598, 0
        %665 = vmatprep.subr.bf16.mxu0 0
        %666 = vmatpush1.bf16.msra.mxu0 0
        %667 = vmatprep.subr.bf16.mxu0 0
        %668 = vmatpush1.bf16.msra.mxu0 0
        %669 = vmatprep.subr.bf16.mxu0 0
        %670 = vmatpush1.bf16.msra.mxu0 0
        %671 = vmatprep.subr.bf16.mxu0 0
        %672 = vmatpush1.bf16.msra.mxu0 0
        %673 = vmatprep.subr.bf16.mxu0 0
        %674 = vmatpush1.bf16.msra.mxu0 0
        %675 = vmatprep.subr.bf16.mxu0 0
        %676 = vmatpush1.bf16.msra.mxu0 0
        %677 = vmatprep.subr.bf16.mxu0 0
        %678 = vmatpush1.bf16.msra.mxu0 0
        %679 = vmatprep.subr.bf16.mxu0 0
        %680 = vmatpush1.bf16.msra.mxu0 %v663
        %681 = vmatprep.subr.bf16.mxu0 0
        %682 = vmatpush2.bf16.msra.mxu0 0
        %683 = vmatprep.subr.bf16.mxu0 0
        %684 = vmatpush2.bf16.msra.mxu0 0
        %685 = vmatprep.subr.bf16.mxu0 0
        %686 = vmatpush2.bf16.msra.mxu0 0
        %687 = vmatprep.subr.bf16.mxu0 0
        %688 = vmatpush2.bf16.msra.mxu0 0
        %689 = vmatprep.subr.bf16.mxu0 0
        %690 = vmatpush2.bf16.msra.mxu0 0
        %691 = vmatprep.subr.bf16.mxu0 0
        %692 = vmatpush2.bf16.msra.mxu0 0
        %693 = vmatprep.subr.bf16.mxu0 0
        %694 = vmatpush2.bf16.msra.mxu0 0
        %695 = vmatprep.subr.bf16.mxu0 0
        %696 = vmatpush2.bf16.msra.mxu0 0
        %697 = vmatprep.mubr.bf16.mxu0 0
        %698 = vmatmul.mubr.bf16.gmra.mxu0 %v659
        %v699 = vpop.f32.mrf.mxu0
        %v700 = vadd.f32 0.0, %v699
        %v701 = vpop.f32.mrf.mxu0
        %v702 = vpop.f32.mrf.mxu0
        %v703 = vpop.f32.mrf.mxu0
        %704 = vdwg.mxu0
        %v705 = vmul.f32 %v700, %v656
        %v706 = vpack.c.bf16 %v705, %v705
        %vm707 = vcmask 125952
        %708 = vst.msk [vmem:[#allocation4] sm:$0xf] %vm707, %v706
        %710 = vrot.lane.b32.xlu0 %v596, 112
        %v711 = vpop.permute.xlu0 %710
        %v713 = vunpack.c.l.b16 %v597
        %v714 = vpack.c.b16 %v713, %v713
        %715 = vrot.lane.b32.xlu0 %v714, 112
        %v716 = vpop.permute.xlu0 %715
        %v718 = vsel %vm599, %v711, 0
        %v721 = vsel %vm599, %v716, 0
        %723 = vmatprep.subr.bf16.mxu0 0
        %724 = vmatpush1.bf16.xpose.msra.mxu0 0
        %725 = vmatprep.subr.bf16.mxu0 0
        %726 = vmatpush1.bf16.xpose.msra.mxu0 0
        %727 = vmatprep.subr.bf16.mxu0 0
        %728 = vmatpush1.bf16.xpose.msra.mxu0 0
        %729 = vmatprep.subr.bf16.mxu0 0
        %730 = vmatpush1.bf16.xpose.msra.mxu0 0
        %731 = vmatprep.subr.bf16.mxu0 0
        %732 = vmatpush1.bf16.xpose.msra.mxu0 0
        %733 = vmatprep.subr.bf16.mxu0 0
        %734 = vmatpush1.bf16.xpose.msra.mxu0 0
        %735 = vmatprep.subr.bf16.mxu0 0
        %736 = vmatpush1.bf16.xpose.msra.mxu0 0
        %737 = vmatprep.subr.bf16.mxu0 0
        %738 = vmatpush1.bf16.xpose.msra.mxu0 %v721
        %739 = vmatprep.subr.bf16.mxu0 0
        %740 = vmatpush2.bf16.xpose.msra.mxu0 0
        %741 = vmatprep.subr.bf16.mxu0 0
        %742 = vmatpush2.bf16.xpose.msra.mxu0 0
        %743 = vmatprep.subr.bf16.mxu0 0
        %744 = vmatpush2.bf16.xpose.msra.mxu0 0
        %745 = vmatprep.subr.bf16.mxu0 0
        %746 = vmatpush2.bf16.xpose.msra.mxu0 0
        %747 = vmatprep.subr.bf16.mxu0 0
        %748 = vmatpush2.bf16.xpose.msra.mxu0 0
        %749 = vmatprep.subr.bf16.mxu0 0
        %750 = vmatpush2.bf16.xpose.msra.mxu0 0
        %751 = vmatprep.subr.bf16.mxu0 0
        %752 = vmatpush2.bf16.xpose.msra.mxu0 0
        %753 = vmatprep.subr.bf16.mxu0 0
        %754 = vmatpush2.bf16.xpose.msra.mxu0 0
        %755 = vmatprep.mubr.bf16.mxu0 0
        %756 = vmatmul.mubr.bf16.gmra.mxu0 %v718
        %v757 = vpop.f32.mrf.mxu0
        %v758 = vadd.f32 0.0, %v757
        %v759 = vpop.f32.mrf.mxu0
        %v760 = vpop.f32.mrf.mxu0
        %v761 = vpop.f32.mrf.mxu0
        %762 = vdwg.mxu0
        %v763 = vsel %vm646, %v758, -inf
        %764 = vmax.xlane.f32.xlu0 %v763
        %v765 = vpop.xlane.xlu0 %764
        %v766 = vsub.f32 %v758, %v765
        %v767 = vmul.f32 %v766, 1.442695
        %v768 = vpow.pop %v767
        %v769 = vsel %vm646, %v768, 0.0
        %770 = vadd.xlane.f32.xlu0 %v769
        %v771 = vpop.xlane.xlu0 %770
        %v772 = vrcp.pop %v771
        %v773 = vpack.c.bf16 %v768, %v768
        %v775 = vunpack.c.l.b16 %v598
        %v776 = vpack.c.b16 %v775, %v775
        %777 = vrot.lane.b32.xlu0 %v776, 112
        %v778 = vpop.permute.xlu0 %777
        %v780 = vsel %vm646, %v773, 0
        %v783 = vsel %vm661, %v778, 0
        %785 = vmatprep.subr.bf16.mxu0 0
        %786 = vmatpush1.bf16.msra.mxu0 0
        %787 = vmatprep.subr.bf16.mxu0 0
        %788 = vmatpush1.bf16.msra.mxu0 0
        %789 = vmatprep.subr.bf16.mxu0 0
        %790 = vmatpush1.bf16.msra.mxu0 0
        %791 = vmatprep.subr.bf16.mxu0 0
        %792 = vmatpush1.bf16.msra.mxu0 0
        %793 = vmatprep.subr.bf16.mxu0 0
        %794 = vmatpush1.bf16.msra.mxu0 0
        %795 = vmatprep.subr.bf16.mxu0 0
        %796 = vmatpush1.bf16.msra.mxu0 0
        %797 = vmatprep.subr.bf16.mxu0 0
        %798 = vmatpush1.bf16.msra.mxu0 0
        %799 = vmatprep.subr.bf16.mxu0 0
        %800 = vmatpush1.bf16.msra.mxu0 %v783
        %801 = vmatprep.subr.bf16.mxu0 0
        %802 = vmatpush2.bf16.msra.mxu0 0
        %803 = vmatprep.subr.bf16.mxu0 0
        %804 = vmatpush2.bf16.msra.mxu0 0
        %805 = vmatprep.subr.bf16.mxu0 0
        %806 = vmatpush2.bf16.msra.mxu0 0
        %807 = vmatprep.subr.bf16.mxu0 0
        %808 = vmatpush2.bf16.msra.mxu0 0
        %809 = vmatprep.subr.bf16.mxu0 0
        %810 = vmatpush2.bf16.msra.mxu0 0
        %811 = vmatprep.subr.bf16.mxu0 0
        %812 = vmatpush2.bf16.msra.mxu0 0
        %813 = vmatprep.subr.bf16.mxu0 0
        %814 = vmatpush2.bf16.msra.mxu0 0
        %815 = vmatprep.subr.bf16.mxu0 0
        %816 = vmatpush2.bf16.msra.mxu0 0
        %817 = vmatprep.mubr.bf16.mxu0 0
        %818 = vmatmul.mubr.bf16.gmra.mxu0 %v780
        %v819 = vpop.f32.mrf.mxu0
        %v820 = vadd.f32 0.0, %v819
        %v821 = vpop.f32.mrf.mxu0
        %v822 = vpop.f32.mrf.mxu0
        %v823 = vpop.f32.mrf.mxu0
        %824 = vdwg.mxu0
        %v825 = vmul.f32 %v820, %v772
        %v826 = vpack.c.bf16 %v825, %v825
        %v828 = vunpack.c.l.b16 %v826
        %v829 = vpack.c.b16 %v828, %v828
        %830 = vrot.lane.b32.xlu0 %v829, 16
        %v831 = vpop.permute.xlu0 %830
        %vm833 = vcmask 257152
        %834 = vst.msk [vmem:[#allocation4] sm:$0xf] %vm833, %v831
        %v835 = vld [vmem:[#allocation4] sm:$0xf]
        %v836 = vld [vmem:[#allocation14] sm:$0xf]
        %v837 = vld [vmem:[#allocation14 + $0x4] sm:$0xf]
        %v838 = vld [vmem:[#allocation14 + $0x8] sm:$0xf]
        %v839 = vld [vmem:[#allocation14 + $0xc] sm:$0xf]
        %v840 = vld [vmem:[%s6] sm:$0x1]
        %v842 = vlaneseq
        %v843 = vshrl.u32 %v842, 7
        %v844 = vsub.s32 0, %v843
        %v845 = vrot.slane %v840, %v844
        %v851 = vunpack.c.l.b16 %v836
        %v852 = vunpack.c.l.b16 %v837
        %v853 = vunpack.c.l.b16 %v838
        %v854 = vunpack.c.l.b16 %v839
        %v855 = vpack.c.b16 %v852, %v851
        %v856 = vpack.c.b16 %v854, %v853
        %v860 = vsel %vm552, %v835, 0
        %862 = vmatprep.subr.bf16.mxu0 0
        %863 = vmatpush1.bf16.msra.mxu0 0
        %864 = vmatprep.subr.bf16.mxu0 0
        %865 = vmatpush1.bf16.msra.mxu0 0
        %866 = vmatprep.subr.bf16.mxu0 0
        %867 = vmatpush1.bf16.msra.mxu0 0
        %868 = vmatprep.subr.bf16.mxu0 0
        %869 = vmatpush1.bf16.msra.mxu0 0
        %870 = vmatprep.subr.bf16.mxu0 0
        %871 = vmatpush1.bf16.msra.mxu0 0
        %872 = vmatprep.subr.bf16.mxu0 0
        %873 = vmatpush1.bf16.msra.mxu0 0
        %874 = vmatprep.subr.bf16.mxu0 0
        %875 = vmatpush1.bf16.msra.mxu0 %v856
        %876 = vmatprep.subr.bf16.mxu0 0
        %877 = vmatpush1.bf16.msra.mxu0 %v855
        %878 = vmatprep.subr.bf16.mxu0 0
        %879 = vmatpush2.bf16.msra.mxu0 0
        %880 = vmatprep.subr.bf16.mxu0 0
        %881 = vmatpush2.bf16.msra.mxu0 0
        %882 = vmatprep.subr.bf16.mxu0 0
        %883 = vmatpush2.bf16.msra.mxu0 0
        %884 = vmatprep.subr.bf16.mxu0 0
        %885 = vmatpush2.bf16.msra.mxu0 0
        %886 = vmatprep.subr.bf16.mxu0 0
        %887 = vmatpush2.bf16.msra.mxu0 0
        %888 = vmatprep.subr.bf16.mxu0 0
        %889 = vmatpush2.bf16.msra.mxu0 0
        %890 = vmatprep.subr.bf16.mxu0 0
        %891 = vmatpush2.bf16.msra.mxu0 0
        %892 = vmatprep.subr.bf16.mxu0 0
        %893 = vmatpush2.bf16.msra.mxu0 0
        %894 = vmatprep.mubr.bf16.mxu0 0
        %895 = vmatmul.mubr.bf16.gmra.mxu0 %v860
        %v896 = vpop.f32.mrf.mxu0
        %v897 = vadd.f32 %v845, %v896
        %v898 = vpop.f32.mrf.mxu0
        %v899 = vpop.f32.mrf.mxu0
        %v900 = vpop.f32.mrf.mxu0
        %901 = vdwg.mxu0
        %902 = vst.msk [vmem:[%s405] sm:$0xff] %vm552, %v897
        %s903 = sand.u32 %s210, 1
        %s904 = scalar_lea.sflag [#allocation7], %s903
        %s905 = sand.u32 %s210, 1
        %s906 = smul.addr %s905, 8
        %s907 = scalar_lea.vmem [#allocation16], %s906
        // Predicated region
        $region77: #{tpu_custom_call.1} parent=47 // pred_check
          %p908 = pneg %p220
        $region78: #{tpu_custom_call.1} parent=47 // pred_check_branch
          %910 = sbr.rel (%p908) target = $region80
        $region79: #{tpu_custom_call.1} parent=47 // pred_region
          %s912 = ssub.s32 128, 128
          %913 = vsyncadd %s904, %s912
          %s914 = sadd.s32 %s34, %s33
          %s915 = smul.addr %s914, 128
          %s916 = scalar_lea.hbm %s7, %s915
          %s918 = sshll.u32 %s907, 4
          %s919 = int_to_ptr.vmem [resolvable:$true] %s918
          %921 = dma.vmem_to_hbm [thread:$0]  %s919, 128, %s916, %s904
        $region80: #{tpu_custom_call.1} parent=47 // pred_fallthru
          _
      $region48: #{tpu_custom_call.1} parent=5 // pred_fallthru
        _
      %p922 = scmp.le.s32.totalorder 2, %s24
      // Predicated region
      $region81: #{tpu_custom_call.1} parent=5 // pred_check
        %p923 = pneg %p922
      $region82: #{tpu_custom_call.1} parent=5 // pred_check_branch
        %925 = sbr.rel (%p923) target = $region84
      $region83: #{tpu_custom_call.1} parent=5 // pred_region
        %s926 = ssub.s32 %s24, 2
        // Predicated region
        $region85: #{tpu_custom_call.1} parent=83 // pred_check
          %p927 = pneg %p226
        $region86: #{tpu_custom_call.1} parent=83 // pred_check_branch
          %929 = sbr.rel (%p927) target = $region88
        $region87: #{tpu_custom_call.1} parent=83 // pred_region
          %s930 = sand.u32 %s211, 1
          %s931 = scalar_lea.sflag [#allocation7], %s930
          %s932 = sand.u32 %s211, 1
          %s933 = smul.addr %s932, 8
          %s934 = scalar_lea.vmem [#allocation16], %s933
          %935 = dma.done %s931, 128
        $region88: #{tpu_custom_call.1} parent=83 // pred_fallthru
          _
      $region84: #{tpu_custom_call.1} parent=5 // pred_fallthru
        _
    $region6: #{tpu_custom_call.1} parent=1 // loop_footer
      %s28 = sadd.s32 1, %s24
    $region7: #{tpu_custom_call.1} parent=1 // loop_footer_branch
      %23 = sbr.rel target = $region3
    $region8: #{tpu_custom_call.1} parent=1 // loop_exit
      _
    %936 = vsyncpa [#allocation6], 1
    %s937 = scalar_lea.sflag [#allocation6], 1
    %938 = vsyncpa %s937, 1
    %939 = vsyncpa [#allocation9], 1
    %s940 = scalar_lea.sflag [#allocation9], 1
    %941 = vsyncpa %s940, 1
    %942 = vsyncpa [#allocation12], 1
    %943 = vsyncpa [#allocation15], 1
    %944 = vsyncpa [#allocation7], 1
    %s945 = scalar_lea.sflag [#allocation7], 1
    %946 = vsyncpa %s945, 1

</llo_original>
